<compile_context>
chip_gen: v5e
topology: v5e:2x2
jax: 0.10.0
libtpu: 0.0.40
codegen_flags: <defaults>
</compile_context>

<pallas_src>
import functools
import math

import jax
import jax.numpy as jnp
from jax import lax
from jax.experimental import pallas as pl
from jax.experimental.pallas import tpu as pltpu


def _round_up(x, m):
    return (x + m - 1) // m * m


def _attn_kernel(*refs, scale, lk_real, has_mask):
    if has_mask:
        q_ref, k_ref, v_ref, m_ref, ctx_ref, w_ref = refs
    else:
        q_ref, k_ref, v_ref, ctx_ref, w_ref = refs

    compute_dtype = q_ref.dtype          # f32, or bf16 on the MXU fast path

    # Fold 1/sqrt(d_q) into q: VPU work on Bb*TQ*D, not Bb*TQ*Lk.
    q = (q_ref[...].astype(jnp.float32) * scale).astype(compute_dtype)
    k = k_ref[...]

    # scores = q @ k^T — contract last axes of both operands directly
    # (no explicit transpose / XLU relayout), f32 accumulation on the MXU.
    s = lax.dot_general(q, k, (((2,), (2,)), ((0,), (0,))),
                        preferred_element_type=jnp.float32)

    if has_mask:
        # masked_fill(mask, -1e9) — mask arrives as int8.
        s = jnp.where(m_ref[...] != 0, jnp.float32(-1e9), s)

    # Padded key columns: generated in-kernel (never read from HBM). Use a
    # value far below -1e9 so padded columns get exactly zero weight while
    # user-masked columns keep the reference -1e9 semantics (fully masked rows
    # stay uniform over the *real* keys, matching the PyTorch module).
    if s.shape[-1] != lk_real:
        col = lax.broadcasted_iota(jnp.int32, s.shape, 2)
        s = jnp.where(col >= lk_real, jnp.float32(-1e30), s)

    # Numerically stable softmax over the key axis (kept in f32 on all gens).
    s = s - jnp.max(s, axis=-1, keepdims=True)
    e = jnp.exp(s)
    denom = jnp.sum(e, axis=-1, keepdims=True)
    w = e * pl.reciprocal(denom, approx=True)

    # TODO(synk): nn.Dropout(p=0.1) is identity in eval mode; training-mode
    # dropout would use pltpu.prng_seed / pltpu.prng_random_bits here.

    # context = w @ v — cast only the matmul operand, never the stored weights.
    ctx = lax.dot_general(w.astype(compute_dtype), v_ref[...],
                          (((2,), (1,)), ((0,), (0,))),
                          preferred_element_type=jnp.float32)

    ctx_ref[...] = ctx.astype(ctx_ref.dtype)
    w_ref[...] = w.astype(w_ref.dtype)


def _pick_batch_block(B, tq, lkp, dp, dvp, in_bytes, max_bb, budget_bytes):
    """Largest divisor of B whose per-grid-step VMEM footprint fits the budget."""
    per_batch = (
        2 * (tq * dp + lkp * dp + lkp * dvp) * in_bytes   # q/k/v tiles, double-buffered
        + 2 * tq * lkp * 1                                # int8 mask, double-buffered
        + 2 * (tq * dvp + tq * lkp) * 4                   # f32 outputs, double-buffered
        + 4 * tq * lkp * 4                                # f32 score/exp/weight temps
    )
    bb = 1
    for cand in range(1, min(B, max_bb) + 1):
        if B % cand == 0 and cand * per_batch <= budget_bytes:
            bb = cand
    return bb


def scaled_dot_attention(q, k, v, mask=None, *, use_bf16_matmul=False,
                         q_tile=128, max_batch_block=8):
    """Pallas TPU forward of ScaledDotAttention.

    q: [B, Lq, D], k: [B, Lk, D], v: [B, Lk, Dv],
    mask: [B, Lq, Lk] bool/int (nonzero == masked out) or None.
    Returns (context [B, Lq, Dv] f32, attn_weight [B, Lq, Lk] f32).
    """
    B, Lq, D = q.shape
    _, Lk, _ = k.shape
    Dv = v.shape[-1]
    scale = 1.0 / math.sqrt(D)

    in_dtype = jnp.bfloat16 if use_bf16_matmul else jnp.float32
    in_bytes = 2 if use_bf16_matmul else 4

    # Pad to lane-dense (x128) / sublane-aligned (x8) tile sizes.
    dp = _round_up(D, 128)
    dvp = _round_up(Dv, 128)
    lkp = _round_up(Lk, 128)
    tq = q_tile if Lq >= q_tile else _round_up(Lq, 8)
    lqp = _round_up(Lq, tq)

    qp = jnp.pad(q.astype(in_dtype), ((0, 0), (0, lqp - Lq), (0, dp - D)))
    kp = jnp.pad(k.astype(in_dtype), ((0, 0), (0, lkp - Lk), (0, dp - D)))
    vp = jnp.pad(v.astype(in_dtype), ((0, 0), (0, lkp - Lk), (0, dvp - Dv)))

    has_mask = mask is not None
    operands = [qp, kp, vp]
    if has_mask:
        mp = jnp.pad(mask.astype(jnp.int8),
                     ((0, 0), (0, lqp - Lq), (0, lkp - Lk)))
        operands.append(mp)

    bb = _pick_batch_block(B, tq, lkp, dp, dvp, in_bytes, max_batch_block,
                           budget_bytes=16 * 1024 * 1024)
    grid = (B // bb, lqp // tq)

    in_specs = [
        pl.BlockSpec((bb, tq, dp), lambda b, i: (b, i, 0)),
        pl.BlockSpec((bb, lkp, dp), lambda b, i: (b, 0, 0)),
        pl.BlockSpec((bb, lkp, dvp), lambda b, i: (b, 0, 0)),
    ]
    if has_mask:
        in_specs.append(pl.BlockSpec((bb, tq, lkp), lambda b, i: (b, i, 0)))

    out_specs = [
        pl.BlockSpec((bb, tq, dvp), lambda b, i: (b, i, 0)),
        pl.BlockSpec((bb, tq, lkp), lambda b, i: (b, i, 0)),
    ]
    out_shape = (
        jax.ShapeDtypeStruct((B, lqp, dvp), jnp.float32),
        jax.ShapeDtypeStruct((B, lqp, lkp), jnp.float32),
    )

    kernel = functools.partial(_attn_kernel, scale=scale, lk_real=Lk,
                               has_mask=has_mask)

    ctx_p, w_p = pl.pallas_call(
        kernel,
        out_shape=out_shape,
        grid_spec=pltpu.PrefetchScalarGridSpec(
            num_scalar_prefetch=0,
            grid=grid,
            in_specs=in_specs,
            out_specs=out_specs,
        ),
        compiler_params=pltpu.CompilerParams(
            dimension_semantics=("parallel", "parallel"),
            vmem_limit_bytes=48 * 1024 * 1024,
        ),
    )(*operands)

    return ctx_p[:, :Lq, :Dv], w_p[:, :Lq, :Lk]


def _reference(q, k, v, mask):
    scale = 1.0 / math.sqrt(q.shape[-1])
    scores = jnp.einsum("bqd,bkd->bqk", q, k,
                        precision=jax.lax.Precision.HIGHEST) * scale
    if mask is not None:
        scores = jnp.where(mask, -1e9, scores)
    w = jax.nn.softmax(scores, axis=-1)
    ctx = jnp.einsum("bqk,bkd->bqd", w, v,
                     precision=jax.lax.Precision.HIGHEST)
    return ctx, w


if __name__ == "__main__":
    key = jax.random.PRNGKey(0)
    B, Lq, Lk, D, Dv = 2, 8, 8, 32, 32
    kq, kk, kv, km = jax.random.split(key, 4)
    q = jax.random.normal(kq, (B, Lq, D), dtype=jnp.float32)
    k = jax.random.normal(kk, (B, Lk, D), dtype=jnp.float32)
    v = jax.random.normal(kv, (B, Lk, Dv), dtype=jnp.float32)
    mask = jax.random.bernoulli(km, p=0.2, shape=(B, Lq, Lk))

    ref_ctx, ref_w = _reference(q, k, v, mask)

    # f32 path (exact module semantics, approx reciprocal only).
    ctx, attn_w = scaled_dot_attention(q, k, v, mask)
    jax.block_until_ready((ctx, attn_w))
    assert ctx.shape == (B, Lq, Dv) and attn_w.shape == (B, Lq, Lk)
    assert jnp.allclose(ctx, ref_ctx, atol=5e-3, rtol=5e-3)
    assert jnp.allclose(attn_w, ref_w, atol=5e-3, rtol=5e-3)

    # bf16 MXU fast path (v6e/v7x) — f32 accumulation, looser tolerance.
    ctx16, w16 = scaled_dot_attention(q, k, v, mask, use_bf16_matmul=True)
    jax.block_until_ready((ctx16, w16))
    assert jnp.allclose(ctx16, ref_ctx, atol=5e-2, rtol=5e-2)
    assert jnp.allclose(w16, ref_w, atol=5e-2, rtol=5e-2)

    print("KERNEL_OK")
</pallas_src>

<mosaic_0001>
module attributes {stable_mosaic.version = 11 : i64} {
  func.func @_attn_kernel(%arg0: i32, %arg1: i32, %arg2: memref<2x8x128xf32, #tpu.memory_space<vmem>>, %arg3: memref<2x128x128xf32, #tpu.memory_space<vmem>>, %arg4: memref<2x128x128xf32, #tpu.memory_space<vmem>>, %arg5: memref<2x8x128xi8, #tpu.memory_space<vmem>>, %arg6: memref<2x8x128xf32, #tpu.memory_space<vmem>>, %arg7: memref<2x8x128xf32, #tpu.memory_space<vmem>>) attributes {dimension_semantics = [#tpu.dimension_semantics<parallel>, #tpu.dimension_semantics<parallel>], iteration_bounds = array<i64: 1, 1>, scalar_prefetch = 0 : i64, scratch_operands = 0 : i64, tpu.core_type = #tpu.core_type<tc>, window_params = [{transform_indices = @transform_0, window_bounds = array<i64: 2, 8, 128>}, {transform_indices = @transform_1, window_bounds = array<i64: 2, 128, 128>}, {transform_indices = @transform_2, window_bounds = array<i64: 2, 128, 128>}, {transform_indices = @transform_3, window_bounds = array<i64: 2, 8, 128>}, {transform_indices = @transform_4, window_bounds = array<i64: 2, 8, 128>}, {transform_indices = @transform_5, window_bounds = array<i64: 2, 8, 128>}]} {
    %c0 = arith.constant 0 : index
    %c0_0 = arith.constant 0 : index
    %c0_1 = arith.constant 0 : index
    %0 = vector.load %arg2[%c0, %c0_0, %c0_1] : memref<2x8x128xf32, #tpu.memory_space<vmem>>, vector<2x8x128xf32>
    %cst = arith.constant 0.176776692 : f32
    %1 = vector.broadcast %cst : f32 to vector<2x8x128xf32>
    %2 = arith.mulf %0, %1 : vector<2x8x128xf32>
    %c0_2 = arith.constant 0 : index
    %c0_3 = arith.constant 0 : index
    %c0_4 = arith.constant 0 : index
    %3 = vector.load %arg3[%c0_2, %c0_3, %c0_4] : memref<2x128x128xf32, #tpu.memory_space<vmem>>, vector<2x128x128xf32>
    %cst_5 = arith.constant dense<0.000000e+00> : vector<2x8x128xf32>
    %4 = tpu.matmul %2, %3, %cst_5 {dimension_numbers = #tpu.dot_dimension_numbers<[2], [2], [1], [1], [0, 0, 0, 1, 1, 1], [0], [0]>} : vector<2x8x128xf32>, vector<2x128x128xf32>, vector<2x8x128xf32> -> vector<2x8x128xf32>
    %c0_6 = arith.constant 0 : index
    %c0_7 = arith.constant 0 : index
    %c0_8 = arith.constant 0 : index
    %5 = vector.load %arg5[%c0_6, %c0_7, %c0_8] : memref<2x8x128xi8, #tpu.memory_space<vmem>>, vector<2x8x128xi8>
    %c0_i8 = arith.constant 0 : i8
    %6 = vector.broadcast %c0_i8 : i8 to vector<2x8x128xi8>
    %7 = arith.cmpi ne, %5, %6 : vector<2x8x128xi8>
    %cst_9 = arith.constant -1.000000e+09 : f32
    %8 = vector.broadcast %cst_9 : f32 to vector<2x8x128xf32>
    %9 = arith.select %7, %8, %4 : vector<2x8x128xi1>, vector<2x8x128xf32>
    %10 = tpu.iota {dimensions = array<i32: 2>} : vector<2x8x128xi32>
    %c8_i32 = arith.constant 8 : i32
    %11 = vector.broadcast %c8_i32 : i32 to vector<2x8x128xi32>
    %12 = arith.cmpi sge, %10, %11 : vector<2x8x128xi32>
    %cst_10 = arith.constant -1.000000e+30 : f32
    %13 = vector.broadcast %cst_10 : f32 to vector<2x8x128xf32>
    %14 = arith.select %12, %13, %9 : vector<2x8x128xi1>, vector<2x8x128xf32>
    %cst_11 = arith.constant dense<0xFF800000> : vector<2x8xf32>
    %15 = vector.multi_reduction <maximumf>, %14, %cst_11 [2] : vector<2x8x128xf32> to vector<2x8xf32>
    %16 = vector.shape_cast %15 : vector<2x8xf32> to vector<2x8x1xf32>
    %17 = vector.broadcast %16 : vector<2x8x1xf32> to vector<2x8x128xf32>
    %18 = arith.subf %14, %17 : vector<2x8x128xf32>
    %19 = math.exp %18 : vector<2x8x128xf32>
    %cst_12 = arith.constant dense<0.000000e+00> : vector<2x8xf32>
    %20 = vector.multi_reduction <add>, %19, %cst_12 [2] : vector<2x8x128xf32> to vector<2x8xf32>
    %21 = vector.shape_cast %20 : vector<2x8xf32> to vector<2x8x1xf32>
    %22 = tpu.reciprocal %21 {approx = true} : vector<2x8x1xf32> -> vector<2x8x1xf32>
    %23 = vector.broadcast %22 : vector<2x8x1xf32> to vector<2x8x128xf32>
    %24 = arith.mulf %19, %23 : vector<2x8x128xf32>
    %c0_13 = arith.constant 0 : index
    %c0_14 = arith.constant 0 : index
    %c0_15 = arith.constant 0 : index
    %25 = vector.load %arg4[%c0_13, %c0_14, %c0_15] : memref<2x128x128xf32, #tpu.memory_space<vmem>>, vector<2x128x128xf32>
    %cst_16 = arith.constant dense<0.000000e+00> : vector<2x8x128xf32>
    %26 = tpu.matmul %24, %25, %cst_16 {dimension_numbers = #tpu.dot_dimension_numbers<[2], [1], [1], [2], [0, 0, 0, 1, 1, 2], [0], [0]>} : vector<2x8x128xf32>, vector<2x128x128xf32>, vector<2x8x128xf32> -> vector<2x8x128xf32>
    %c0_17 = arith.constant 0 : index
    %c0_18 = arith.constant 0 : index
    %c0_19 = arith.constant 0 : index
    %27 = vector.load %arg6[%c0_17, %c0_18, %c0_19] : memref<2x8x128xf32, #tpu.memory_space<vmem>>, vector<2x8x128xf32>
    tpu.vector_store %arg6[%c0_17, %c0_18, %c0_19], %26 {strides = array<i32>} : memref<2x8x128xf32, #tpu.memory_space<vmem>>, vector<2x8x128xf32>,
    %c0_20 = arith.constant 0 : index
    %c0_21 = arith.constant 0 : index
    %c0_22 = arith.constant 0 : index
    %28 = vector.load %arg7[%c0_20, %c0_21, %c0_22] : memref<2x8x128xf32, #tpu.memory_space<vmem>>, vector<2x8x128xf32>
    tpu.vector_store %arg7[%c0_20, %c0_21, %c0_22], %24 {strides = array<i32>} : memref<2x8x128xf32, #tpu.memory_space<vmem>>, vector<2x8x128xf32>,
    return
  }
  func.func @transform_0(%arg0: i32, %arg1: i32) -> (i32, i32, i32) {
    %c0_i32 = arith.constant 0 : i32
    %c0_i32_0 = arith.constant 0 : i32
    return %arg0, %arg1, %c0_i32 : i32, i32, i32
  }
  func.func @transform_1(%arg0: i32, %arg1: i32) -> (i32, i32, i32) {
    %c0_i32 = arith.constant 0 : i32
    %c0_i32_0 = arith.constant 0 : i32
    %c0_i32_1 = arith.constant 0 : i32
    return %arg0, %c0_i32, %c0_i32_0 : i32, i32, i32
  }
  func.func @transform_2(%arg0: i32, %arg1: i32) -> (i32, i32, i32) {
    %c0_i32 = arith.constant 0 : i32
    %c0_i32_0 = arith.constant 0 : i32
    %c0_i32_1 = arith.constant 0 : i32
    return %arg0, %c0_i32, %c0_i32_0 : i32, i32, i32
  }
  func.func @transform_3(%arg0: i32, %arg1: i32) -> (i32, i32, i32) {
    %c0_i32 = arith.constant 0 : i32
    %c0_i32_0 = arith.constant 0 : i32
    return %arg0, %arg1, %c0_i32 : i32, i32, i32
  }
  func.func @transform_4(%arg0: i32, %arg1: i32) -> (i32, i32, i32) {
    %c0_i32 = arith.constant 0 : i32
    %c0_i32_0 = arith.constant 0 : i32
    return %arg0, %arg1, %c0_i32 : i32, i32, i32
  }
  func.func @transform_5(%arg0: i32, %arg1: i32) -> (i32, i32, i32) {
    %c0_i32 = arith.constant 0 : i32
    %c0_i32_0 = arith.constant 0 : i32
    return %arg0, %arg1, %c0_i32 : i32, i32, i32
  }
}

</mosaic_0001>

<llo_original>
// kernel: tpu_custom_call.1
$region0: #{tpu_custom_call.1}
  #allocation0 [shape = 'u32[]', space=smem, size = 0x4, offset = 0x4, fixed_abs, tag = 'smem constant byte address 0x4 - core index']
  #allocation1 [shape = 'u32[72,128]{1,0:T(1,128)}', space=vmem, size = 0x9000, scoped, tag = 'internal scratch']
  %s0 = inlined_call_operand.hbm [shape: f32[2,8,128], index: 0, kind: input, shape index: {}]
  %s1 = inlined_call_operand.hbm [shape: f32[2,128,128], index: 1, kind: input, shape index: {}]
  %s2 = inlined_call_operand.hbm [shape: f32[2,128,128], index: 2, kind: input, shape index: {}]
  %s3 = inlined_call_operand.hbm [shape: s8[2,8,128], index: 3, kind: input, shape index: {}]
  %s4 = inlined_call_operand.hbm [shape: f32[2,8,128], index: 4, kind: output, shape index: {0}]
  %s5 = inlined_call_operand.hbm [shape: f32[2,8,128], index: 5, kind: output, shape index: {1}]
  %6 = xla_tuple %s4, %s5
  %s7 = sld [smem:[#allocation0]]
  $region50: #{tpu_custom_call.1} parent=0
    _
  %s9 = ssub.s32 1, %s7
  %s10 = scalar_select 0, %s9, %s7
  $region1: #{tpu_custom_call.1} parent=0
    #allocation2 [shape = 'u8[8192]{0}', space=vmem, size = 0x2000, scoped, tag = 'input window, operand 0, single buffered']
    #allocation3 [shape = 's32[1]{0}', space=sflag, size = 0x4, scoped, tag = 'scoped memory for tpu_custom_call.1']
    #allocation4 [shape = 's32[1]{0}', space=sflag, size = 0x4, scoped, tag = 'scoped memory for tpu_custom_call.1']
    #allocation5 [shape = 'u8[131072]{0}', space=vmem, size = 0x20000, scoped, tag = 'input window, operand 1, single buffered']
    #allocation6 [shape = 's32[1]{0}', space=sflag, size = 0x4, scoped, tag = 'scoped memory for tpu_custom_call.1']
    #allocation7 [shape = 'u8[131072]{0}', space=vmem, size = 0x20000, scoped, tag = 'input window, operand 2, single buffered']
    #allocation8 [shape = 'u8[2048]{0}', space=vmem, size = 0x800, scoped, tag = 'input window, operand 3, single buffered']
    #allocation9 [shape = 's32[1]{0}', space=sflag, size = 0x4, scoped, tag = 'scoped memory for tpu_custom_call.1']
    #allocation10 [shape = 'u8[8192]{0}', space=vmem, size = 0x2000, scoped, tag = 'output window, operand 0, single buffered']
    #allocation11 [shape = 'u8[8192]{0}', space=vmem, size = 0x2000, scoped, tag = 'output window, operand 1, single buffered']
    #allocation12 [shape = 's32[1]{0}', space=sflag, size = 0x4, scoped, tag = 'scoped memory for tpu_custom_call.1']
    %11 = vsyncpa [#allocation3], 0
    %12 = vsyncpa [#allocation6], 0
    %13 = vsyncpa [#allocation9], 0
    %14 = vsyncpa [#allocation4], 0
    %15 = vsyncpa [#allocation12], 0
    // Predicated region
    $region2: #{tpu_custom_call.1} parent=1 // pred_check
      _
    $region3: #{tpu_custom_call.1} parent=1 // pred_check_branch
      %17 = sbr.rel (0) target = $region5
    $region4: #{tpu_custom_call.1} parent=1 // pred_region
      %19 = vsyncadd [#allocation3], 0
      %s20 = sshll.u32 %s0, 4
      %s21 = int_to_ptr.hbm [resolvable:$true] %s20
      %s22 = sshll.u32 [#allocation2], 4
      %s23 = int_to_ptr.vmem [resolvable:$true] %s22
      %28 = dma.hbm_to_vmem [thread:$0]  %s21, 256, %s23, [#allocation3], 128, 128, 8
    $region5: #{tpu_custom_call.1} parent=1 // pred_fallthru
      _
    // Predicated region
    $region6: #{tpu_custom_call.1} parent=1 // pred_check
      _
    $region7: #{tpu_custom_call.1} parent=1 // pred_check_branch
      %30 = sbr.rel (0) target = $region9
    $region8: #{tpu_custom_call.1} parent=1 // pred_region
      %32 = vsyncadd [#allocation6], 0
      %s33 = sshll.u32 %s1, 4
      %s34 = int_to_ptr.hbm [resolvable:$true] %s33
      %s35 = sshll.u32 [#allocation5], 4
      %s36 = int_to_ptr.vmem [resolvable:$true] %s35
      %41 = dma.hbm_to_vmem [thread:$0]  %s34, 4096, %s36, [#allocation6], 128, 128, 8
    $region9: #{tpu_custom_call.1} parent=1 // pred_fallthru
      _
    // Predicated region
    $region10: #{tpu_custom_call.1} parent=1 // pred_check
      _
    $region11: #{tpu_custom_call.1} parent=1 // pred_check_branch
      %43 = sbr.rel (0) target = $region13
    $region12: #{tpu_custom_call.1} parent=1 // pred_region
      %45 = vsyncadd [#allocation6], 0
      %s46 = sshll.u32 %s2, 4
      %s47 = int_to_ptr.hbm [resolvable:$true] %s46
      %s48 = sshll.u32 [#allocation7], 4
      %s49 = int_to_ptr.vmem [resolvable:$true] %s48
      %54 = dma.hbm_to_vmem [thread:$0]  %s47, 4096, %s49, [#allocation6], 128, 128, 8
    $region13: #{tpu_custom_call.1} parent=1 // pred_fallthru
      _
    // Predicated region
    $region14: #{tpu_custom_call.1} parent=1 // pred_check
      _
    $region15: #{tpu_custom_call.1} parent=1 // pred_check_branch
      %56 = sbr.rel (0) target = $region17
    $region16: #{tpu_custom_call.1} parent=1 // pred_region
      %58 = vsyncadd [#allocation9], 0
      %s59 = sshll.u32 %s3, 4
      %s60 = int_to_ptr.hbm [resolvable:$true] %s59
      %s61 = sshll.u32 [#allocation8], 4
      %s62 = int_to_ptr.vmem [resolvable:$true] %s61
      %67 = dma.hbm_to_vmem [thread:$0]  %s60, 64, %s62, [#allocation9], 32, 32, 2
    $region17: #{tpu_custom_call.1} parent=1 // pred_fallthru
      _
    // Predicated region
    $region18: #{tpu_custom_call.1} parent=1 // pred_check
      _
    $region19: #{tpu_custom_call.1} parent=1 // pred_check_branch
      %69 = sbr.rel (0) target = $region21
    $region20: #{tpu_custom_call.1} parent=1 // pred_region
      %71 = dma.done [#allocation3], 256
    $region21: #{tpu_custom_call.1} parent=1 // pred_fallthru
      _
    // Predicated region
    $region22: #{tpu_custom_call.1} parent=1 // pred_check
      _
    $region23: #{tpu_custom_call.1} parent=1 // pred_check_branch
      %73 = sbr.rel (0) target = $region25
    $region24: #{tpu_custom_call.1} parent=1 // pred_region
      %75 = dma.done [#allocation6], 4096
    $region25: #{tpu_custom_call.1} parent=1 // pred_fallthru
      _
    // Predicated region
    $region26: #{tpu_custom_call.1} parent=1 // pred_check
      _
    $region27: #{tpu_custom_call.1} parent=1 // pred_check_branch
      %77 = sbr.rel (0) target = $region29
    $region28: #{tpu_custom_call.1} parent=1 // pred_region
      %79 = dma.done [#allocation6], 4096
    $region29: #{tpu_custom_call.1} parent=1 // pred_fallthru
      _
    // Predicated region
    $region30: #{tpu_custom_call.1} parent=1 // pred_check
      _
    $region31: #{tpu_custom_call.1} parent=1 // pred_check_branch
      %81 = sbr.rel (0) target = $region33
    $region32: #{tpu_custom_call.1} parent=1 // pred_region
      %83 = dma.done [#allocation9], 64
    $region33: #{tpu_custom_call.1} parent=1 // pred_fallthru
      _
    %v86 = vld [vmem:[#allocation2] sm:$0xff]
    %v87 = vld [vmem:[#allocation2 + $0x8] sm:$0xff]
    %v88 = vmul.f32 %v86, 0.17677669
    %v89 = vmul.f32 %v87, 0.17677669
    %v90 = vld [vmem:[#allocation5] sm:$0xff]
    %v91 = vld [vmem:[#allocation5 + $0x8] sm:$0xff]
    %v92 = vld [vmem:[#allocation5 + $0x10] sm:$0xff]
    %v93 = vld [vmem:[#allocation5 + $0x18] sm:$0xff]
    %v94 = vld [vmem:[#allocation5 + $0x20] sm:$0xff]
    %v95 = vld [vmem:[#allocation5 + $0x28] sm:$0xff]
    %v96 = vld [vmem:[#allocation5 + $0x30] sm:$0xff]
    %v97 = vld [vmem:[#allocation5 + $0x38] sm:$0xff]
    %v98 = vld [vmem:[#allocation5 + $0x40] sm:$0xff]
    %v99 = vld [vmem:[#allocation5 + $0x48] sm:$0xff]
    %v100 = vld [vmem:[#allocation5 + $0x50] sm:$0xff]
    %v101 = vld [vmem:[#allocation5 + $0x58] sm:$0xff]
    %v102 = vld [vmem:[#allocation5 + $0x60] sm:$0xff]
    %v103 = vld [vmem:[#allocation5 + $0x68] sm:$0xff]
    %v104 = vld [vmem:[#allocation5 + $0x70] sm:$0xff]
    %v105 = vld [vmem:[#allocation5 + $0x78] sm:$0xff]
    %v106 = vld [vmem:[#allocation5 + $0x80] sm:$0xff]
    %v107 = vld [vmem:[#allocation5 + $0x88] sm:$0xff]
    %v108 = vld [vmem:[#allocation5 + $0x90] sm:$0xff]
    %v109 = vld [vmem:[#allocation5 + $0x98] sm:$0xff]
    %v110 = vld [vmem:[#allocation5 + $0xa0] sm:$0xff]
    %v111 = vld [vmem:[#allocation5 + $0xa8] sm:$0xff]
    %v112 = vld [vmem:[#allocation5 + $0xb0] sm:$0xff]
    %v113 = vld [vmem:[#allocation5 + $0xb8] sm:$0xff]
    %v114 = vld [vmem:[#allocation5 + $0xc0] sm:$0xff]
    %v115 = vld [vmem:[#allocation5 + $0xc8] sm:$0xff]
    %v116 = vld [vmem:[#allocation5 + $0xd0] sm:$0xff]
    %v117 = vld [vmem:[#allocation5 + $0xd8] sm:$0xff]
    %v118 = vld [vmem:[#allocation5 + $0xe0] sm:$0xff]
    %v119 = vld [vmem:[#allocation5 + $0xe8] sm:$0xff]
    %v120 = vld [vmem:[#allocation5 + $0xf0] sm:$0xff]
    %v121 = vld [vmem:[#allocation5 + $0xf8] sm:$0xff]
    %122 = vmatpush.xpose.msra.mxu0 %v105
    %123 = vmatpush.xpose.msra.mxu0 %v104
    %124 = vmatpush.xpose.msra.mxu0 %v103
    %125 = vmatpush.xpose.msra.mxu0 %v102
    %126 = vmatpush.xpose.msra.mxu0 %v101
    %127 = vmatpush.xpose.msra.mxu0 %v100
    %128 = vmatpush.xpose.msra.mxu0 %v99
    %129 = vmatpush.xpose.msra.mxu0 %v98
    %130 = vmatpush.xpose.msra.mxu0 %v97
    %131 = vmatpush.xpose.msra.mxu0 %v96
    %132 = vmatpush.xpose.msra.mxu0 %v95
    %133 = vmatpush.xpose.msra.mxu0 %v94
    %134 = vmatpush.xpose.msra.mxu0 %v93
    %135 = vmatpush.xpose.msra.mxu0 %v92
    %136 = vmatpush.xpose.msra.mxu0 %v91
    %137 = vmatpush.xpose.msra.mxu0 %v90
    %138 = vmatmul.f32.gmra.mxu0 %v88
    %v139 = vpop.f32.mrf.mxu0
    %v140 = vadd.f32 0.0, %v139
    %141 = vdwg.mxu0
    %142 = vmatpush.xpose.msra.mxu0 %v121
    %143 = vmatpush.xpose.msra.mxu0 %v120
    %144 = vmatpush.xpose.msra.mxu0 %v119
    %145 = vmatpush.xpose.msra.mxu0 %v118
    %146 = vmatpush.xpose.msra.mxu0 %v117
    %147 = vmatpush.xpose.msra.mxu0 %v116
    %148 = vmatpush.xpose.msra.mxu0 %v115
    %149 = vmatpush.xpose.msra.mxu0 %v114
    %150 = vmatpush.xpose.msra.mxu0 %v113
    %151 = vmatpush.xpose.msra.mxu0 %v112
    %152 = vmatpush.xpose.msra.mxu0 %v111
    %153 = vmatpush.xpose.msra.mxu0 %v110
    %154 = vmatpush.xpose.msra.mxu0 %v109
    %155 = vmatpush.xpose.msra.mxu0 %v108
    %156 = vmatpush.xpose.msra.mxu0 %v107
    %157 = vmatpush.xpose.msra.mxu0 %v106
    %158 = vmatmul.f32.gmra.mxu0 %v89
    %v159 = vpop.f32.mrf.mxu0
    %v160 = vadd.f32 0.0, %v159
    %161 = vdwg.mxu0
    %v162 = vld [vmem:[#allocation8] sm:$0x3]
    %v163 = vld [vmem:[#allocation8 + $0x2] sm:$0x3]
    %vm164 = vnez %v162
    %vm165 = vnez %v163
    %v166 = vsel %vm164, 16843009, 0
    %v167 = vsel %vm165, 16843009, 0
    %v168 = vunpack.c.0.s8 %v166
    %v169 = vunpack.c.0.s8 %v167
    %vm170 = vcmp.ne.s32.totalorder %v168, 0
    %vm171 = vcmp.ne.s32.totalorder %v169, 0
    %v172 = vsel %vm170, -1e+09, %v140
    %v173 = vsel %vm171, -1e+09, %v160
    %v174 = vlaneseq
    %v175 = vand.u32 %v174, 127
    %vm176 = vcmp.ge.s32.totalorder %v175, 8
    %v177 = vsel %vm176, -1e+30, %v172
    %v178 = vsel %vm176, -1e+30, %v173
    %179 = vmax.xlane.f32.xlu0 %v177
    %v180 = vpop.xlane.xlu0 %179
    %181 = vmax.xlane.f32.xlu0 %v178
    %v182 = vpop.xlane.xlu0 %181
    %v183 = vsub.f32 %v177, %v180
    %v184 = vsub.f32 %v178, %v182
    %v185 = vmul.f32 %v183, 1.442695
    %v186 = vpow.pop %v185
    %v187 = vmul.f32 %v184, 1.442695
    %v188 = vpow.pop %v187
    %189 = vadd.xlane.f32.xlu0 %v186
    %v190 = vpop.xlane.xlu0 %189
    %191 = vadd.xlane.f32.xlu0 %v188
    %v192 = vpop.xlane.xlu0 %191
    %v193 = vrcp.pop %v190
    %v194 = vrcp.pop %v192
    %v195 = vmul.f32 %v186, %v193
    %v196 = vmul.f32 %v188, %v194
    %v197 = vld [vmem:[#allocation7] sm:$0xff]
    %v198 = vld [vmem:[#allocation7 + $0x8] sm:$0xff]
    %v199 = vld [vmem:[#allocation7 + $0x10] sm:$0xff]
    %v200 = vld [vmem:[#allocation7 + $0x18] sm:$0xff]
    %v201 = vld [vmem:[#allocation7 + $0x20] sm:$0xff]
    %v202 = vld [vmem:[#allocation7 + $0x28] sm:$0xff]
    %v203 = vld [vmem:[#allocation7 + $0x30] sm:$0xff]
    %v204 = vld [vmem:[#allocation7 + $0x38] sm:$0xff]
    %v205 = vld [vmem:[#allocation7 + $0x40] sm:$0xff]
    %v206 = vld [vmem:[#allocation7 + $0x48] sm:$0xff]
    %v207 = vld [vmem:[#allocation7 + $0x50] sm:$0xff]
    %v208 = vld [vmem:[#allocation7 + $0x58] sm:$0xff]
    %v209 = vld [vmem:[#allocation7 + $0x60] sm:$0xff]
    %v210 = vld [vmem:[#allocation7 + $0x68] sm:$0xff]
    %v211 = vld [vmem:[#allocation7 + $0x70] sm:$0xff]
    %v212 = vld [vmem:[#allocation7 + $0x78] sm:$0xff]
    %v213 = vld [vmem:[#allocation7 + $0x80] sm:$0xff]
    %v214 = vld [vmem:[#allocation7 + $0x88] sm:$0xff]
    %v215 = vld [vmem:[#allocation7 + $0x90] sm:$0xff]
    %v216 = vld [vmem:[#allocation7 + $0x98] sm:$0xff]
    %v217 = vld [vmem:[#allocation7 + $0xa0] sm:$0xff]
    %v218 = vld [vmem:[#allocation7 + $0xa8] sm:$0xff]
    %v219 = vld [vmem:[#allocation7 + $0xb0] sm:$0xff]
    %v220 = vld [vmem:[#allocation7 + $0xb8] sm:$0xff]
    %v221 = vld [vmem:[#allocation7 + $0xc0] sm:$0xff]
    %v222 = vld [vmem:[#allocation7 + $0xc8] sm:$0xff]
    %v223 = vld [vmem:[#allocation7 + $0xd0] sm:$0xff]
    %v224 = vld [vmem:[#allocation7 + $0xd8] sm:$0xff]
    %v225 = vld [vmem:[#allocation7 + $0xe0] sm:$0xff]
    %v226 = vld [vmem:[#allocation7 + $0xe8] sm:$0xff]
    %v227 = vld [vmem:[#allocation7 + $0xf0] sm:$0xff]
    %v228 = vld [vmem:[#allocation7 + $0xf8] sm:$0xff]
    %229 = vmatpush.msra.mxu0 %v212
    %230 = vmatpush.msra.mxu0 %v211
    %231 = vmatpush.msra.mxu0 %v210
    %232 = vmatpush.msra.mxu0 %v209
    %233 = vmatpush.msra.mxu0 %v208
    %234 = vmatpush.msra.mxu0 %v207
    %235 = vmatpush.msra.mxu0 %v206
    %236 = vmatpush.msra.mxu0 %v205
    %237 = vmatpush.msra.mxu0 %v204
    %238 = vmatpush.msra.mxu0 %v203
    %239 = vmatpush.msra.mxu0 %v202
    %240 = vmatpush.msra.mxu0 %v201
    %241 = vmatpush.msra.mxu0 %v200
    %242 = vmatpush.msra.mxu0 %v199
    %243 = vmatpush.msra.mxu0 %v198
    %244 = vmatpush.msra.mxu0 %v197
    %245 = vmatmul.f32.gmra.mxu0 %v195
    %v246 = vpop.f32.mrf.mxu0
    %v247 = vadd.f32 0.0, %v246
    %248 = vdwg.mxu0
    %249 = vmatpush.msra.mxu0 %v228
    %250 = vmatpush.msra.mxu0 %v227
    %251 = vmatpush.msra.mxu0 %v226
    %252 = vmatpush.msra.mxu0 %v225
    %253 = vmatpush.msra.mxu0 %v224
    %254 = vmatpush.msra.mxu0 %v223
    %255 = vmatpush.msra.mxu0 %v222
    %256 = vmatpush.msra.mxu0 %v221
    %257 = vmatpush.msra.mxu0 %v220
    %258 = vmatpush.msra.mxu0 %v219
    %259 = vmatpush.msra.mxu0 %v218
    %260 = vmatpush.msra.mxu0 %v217
    %261 = vmatpush.msra.mxu0 %v216
    %262 = vmatpush.msra.mxu0 %v215
    %263 = vmatpush.msra.mxu0 %v214
    %264 = vmatpush.msra.mxu0 %v213
    %265 = vmatmul.f32.gmra.mxu0 %v196
    %v266 = vpop.f32.mrf.mxu0
    %v267 = vadd.f32 0.0, %v266
    %268 = vdwg.mxu0
    %269 = vst [vmem:[#allocation10] sm:$0xff] %v247
    %270 = vst [vmem:[#allocation10 + $0x8] sm:$0xff] %v267
    %271 = vst [vmem:[#allocation11] sm:$0xff] %v195
    %272 = vst [vmem:[#allocation11 + $0x8] sm:$0xff] %v196
    // Predicated region
    $region34: #{tpu_custom_call.1} parent=1 // pred_check
      _
    $region35: #{tpu_custom_call.1} parent=1 // pred_check_branch
      %274 = sbr.rel (0) target = $region37
    $region36: #{tpu_custom_call.1} parent=1 // pred_region
      %276 = vsyncadd [#allocation4], 0
      %s277 = sshll.u32 [#allocation10], 4
      %s278 = int_to_ptr.vmem [resolvable:$true] %s277
      %s279 = sshll.u32 %s4, 4
      %s280 = int_to_ptr.hbm [resolvable:$true] %s279
      %285 = dma.vmem_to_hbm [thread:$0]  %s278, 256, %s280, [#allocation4], 128, 128, 8
    $region37: #{tpu_custom_call.1} parent=1 // pred_fallthru
      _
    // Predicated region
    $region38: #{tpu_custom_call.1} parent=1 // pred_check
      _
    $region39: #{tpu_custom_call.1} parent=1 // pred_check_branch
      %287 = sbr.rel (0) target = $region41
    $region40: #{tpu_custom_call.1} parent=1 // pred_region
      %289 = vsyncadd [#allocation12], 0
      %s290 = sshll.u32 [#allocation11], 4
      %s291 = int_to_ptr.vmem [resolvable:$true] %s290
      %s292 = sshll.u32 %s5, 4
      %s293 = int_to_ptr.hbm [resolvable:$true] %s292
      %298 = dma.vmem_to_hbm [thread:$0]  %s291, 256, %s293, [#allocation12], 128, 128, 8
    $region41: #{tpu_custom_call.1} parent=1 // pred_fallthru
      _
    // Predicated region
    $region42: #{tpu_custom_call.1} parent=1 // pred_check
      _
    $region43: #{tpu_custom_call.1} parent=1 // pred_check_branch
      %300 = sbr.rel (0) target = $region45
    $region44: #{tpu_custom_call.1} parent=1 // pred_region
      %302 = dma.done [#allocation4], 256
    $region45: #{tpu_custom_call.1} parent=1 // pred_fallthru
      _
    // Predicated region
    $region46: #{tpu_custom_call.1} parent=1 // pred_check
      _
    $region47: #{tpu_custom_call.1} parent=1 // pred_check_branch
      %304 = sbr.rel (0) target = $region49
    $region48: #{tpu_custom_call.1} parent=1 // pred_region
      %306 = dma.done [#allocation12], 256
    $region49: #{tpu_custom_call.1} parent=1 // pred_fallthru
      _
    %307 = vsyncpa [#allocation3], 1
    %308 = vsyncpa [#allocation6], 1
    %309 = vsyncpa [#allocation9], 1
    %310 = vsyncpa [#allocation4], 1
    %311 = vsyncpa [#allocation12], 1

</llo_original>
